<compile_context>
chip_gen: v7x
topology: tpu7x:2x2x1
jax: 0.10.0
libtpu: 0.0.40
codegen_flags: <defaults>
</compile_context>

<pallas_src>
import numpy as np
import jax
import jax.numpy as jnp
from jax.experimental import pallas as pl
from jax.experimental.pallas import tpu as pltpu


BT601_RGB2YUV_MAT = np.array(
    [[0.299, 0.587, 0.114],
     [-0.168736, -0.331264, 0.5],
     [0.5, -0.418688, -0.081312]])

BT601_YUV2RGB_MAT = np.array(
    [[1.0, 0.0, 1.402],
     [1.0, -0.344136, -0.714136],
     [1.0, 1.772, 0.0]])


def dct_mat_coeff(L=8):
    C = np.zeros((L, L), dtype=np.float64)
    for k in range(L):
        for n in range(L):
            if k == 0:
                C[k, n] = np.sqrt(1.0 / L)
            else:
                C[k, n] = np.sqrt(2.0 / L) * np.cos(np.pi * k * (0.5 + n) / L)
    return C


# ---------------------------------------------------------------------------
# 8x8 block DCT:  out[b] = C_col @ x[b] @ C_row^T, fused as one Kron matmul.
# ---------------------------------------------------------------------------
def _dct_kron_kernel(w_ref, x_ref, o_ref):
    # (TB, 128) @ (128, 128) on the MXU; lane-dense store of the whole slab.
    o_ref[...] = jnp.dot(
        x_ref[...], w_ref[...], preferred_element_type=jnp.float32
    ).astype(o_ref.dtype)


def dct_blocks(x, dct_mat_col, dct_mat_row, *, tb=1024, g=2):
    """2-D DCT of a batch of blocks.

    x: (B, cdim, rdim) float32.  Returns (B, cdim, rdim) float32 with
    out[b] = C_col @ x[b] @ C_row^T (identical to the PyTorch einsum chain).
    """
    B, cdim, rdim = x.shape
    assert dct_mat_col.shape == (cdim, cdim)
    assert dct_mat_row.shape == (rdim, rdim)
    blk = cdim * rdim                 # 64 for 8x8 blocks
    lane = blk * g                    # 128 for g=2  -> lane-dense output

    # Fused constant: block_diag of g copies of K^T, K = kron(C_col, C_row).
    # Row-major flattening keeps it bit-consistent with C_col X C_row^T.
    K = np.kron(np.asarray(dct_mat_col, np.float64),
                np.asarray(dct_mat_row, np.float64))
    w_np = np.zeros((lane, lane), np.float64)
    for i in range(g):
        w_np[i * blk:(i + 1) * blk, i * blk:(i + 1) * blk] = K.T
    W = jnp.asarray(w_np, x.dtype)

    # Pack g adjacent blocks per row and pad the row count to a tile multiple.
    rows = -(-B // g)
    tb_eff = min(tb, max(8, ((rows + 7) // 8) * 8))
    rows_pad = ((rows + tb_eff - 1) // tb_eff) * tb_eff
    b_pad = rows_pad * g

    x2d = x.reshape(B, blk)
    if b_pad != B:
        x2d = jnp.pad(x2d, ((0, b_pad - B), (0, 0)))
    xp = x2d.reshape(rows_pad, lane)

    itemsize = jnp.dtype(x.dtype).itemsize
    cost = pl.CostEstimate(
        flops=2 * rows_pad * lane * lane,
        transcendentals=0,
        bytes_accessed=(2 * rows_pad * lane + lane * lane) * itemsize,
    )

    out = pl.pallas_call(
        _dct_kron_kernel,
        out_shape=jax.ShapeDtypeStruct((rows_pad, lane), x.dtype),
        grid_spec=pl.GridSpec(
            grid=(rows_pad // tb_eff,),
            in_specs=[
                # Constant matrix: same block every step -> fetched once.
                pl.BlockSpec((lane, lane), lambda i: (0, 0)),
                # Streaming lane-dense input slab.
                pl.BlockSpec((tb_eff, lane), lambda i: (i, 0)),
            ],
            out_specs=pl.BlockSpec((tb_eff, lane), lambda i: (i, 0)),
        ),
        compiler_params=pltpu.CompilerParams(
            dimension_semantics=("parallel",),
        ),
        cost_estimate=cost,
    )(W, xp)

    return out.reshape(b_pad, blk)[:B].reshape(B, cdim, rdim)


# ---------------------------------------------------------------------------
# BT.601 colour conversions (RGB2YUV / YUV2RGB submodules, bit_depth=8).
# Pure VPU work on flattened (1, 3, H*W) slabs; one batch element per step.
# ---------------------------------------------------------------------------
def _rgb2yuv_kernel(x_ref, o_ref):
    m = BT601_RGB2YUV_MAT
    r = x_ref[0, 0]
    g = x_ref[0, 1]
    b = x_ref[0, 2]
    o_ref[0, 0] = float(m[0, 0]) * r + float(m[0, 1]) * g + float(m[0, 2]) * b
    o_ref[0, 1] = float(m[1, 0]) * r + float(m[1, 1]) * g + float(m[1, 2]) * b + 128.0
    o_ref[0, 2] = float(m[2, 0]) * r + float(m[2, 1]) * g + float(m[2, 2]) * b + 128.0


def _yuv2rgb_kernel(x_ref, o_ref):
    m = BT601_YUV2RGB_MAT
    y = x_ref[0, 0]
    u = x_ref[0, 1] - 128.0
    v = x_ref[0, 2] - 128.0
    o_ref[0, 0] = float(m[0, 0]) * y + float(m[0, 1]) * u + float(m[0, 2]) * v
    o_ref[0, 1] = float(m[1, 0]) * y + float(m[1, 1]) * u + float(m[1, 2]) * v
    o_ref[0, 2] = float(m[2, 0]) * y + float(m[2, 1]) * u + float(m[2, 2]) * v


def _color_convert(x, kernel):
    B, C, H, W = x.shape
    assert C == 3
    x2 = x.reshape(B, C, H * W)
    out = pl.pallas_call(
        kernel,
        out_shape=jax.ShapeDtypeStruct((B, C, H * W), x.dtype),
        grid_spec=pl.GridSpec(
            grid=(B,),
            in_specs=[pl.BlockSpec((1, C, H * W), lambda b: (b, 0, 0))],
            out_specs=pl.BlockSpec((1, C, H * W), lambda b: (b, 0, 0)),
        ),
        compiler_params=pltpu.CompilerParams(
            dimension_semantics=("parallel",),
        ),
    )(x2)
    return out.reshape(B, C, H, W)


def rgb2yuv(x):
    return _color_convert(x, _rgb2yuv_kernel)


def yuv2rgb(x):
    return _color_convert(x, _yuv2rgb_kernel)


# ---------------------------------------------------------------------------
if __name__ == "__main__":
    key = jax.random.PRNGKey(0)
    B, C, H, W = 2, 3, 16, 16
    x_rgb = jax.random.uniform(key, (B, C, H, W), dtype=jnp.float32,
                               minval=0.0, maxval=255.0)

    r2y = jnp.asarray(BT601_RGB2YUV_MAT, jnp.float32)
    y2r = jnp.asarray(BT601_YUV2RGB_MAT, jnp.float32)
    uvo = jnp.asarray([0.0, 128.0, 128.0], jnp.float32).reshape(1, 3, 1, 1)

    # 1) RGB -> YUV
    yuv = jax.block_until_ready(rgb2yuv(x_rgb))
    yuv_ref = jnp.einsum("bchw,cd->bdhw", x_rgb, r2y.T) + uvo
    np.testing.assert_allclose(np.asarray(yuv), np.asarray(yuv_ref),
                               rtol=1e-5, atol=1e-3)

    # 2) 8x8 block DCT (forward transform the JPEG proxy applies per block)
    blocks = yuv.reshape(B, C, H // 8, 8, W // 8, 8)
    blocks = blocks.transpose(0, 1, 2, 4, 3, 5).reshape(-1, 8, 8)   # (24, 8, 8)
    cmat = jnp.asarray(dct_mat_coeff(8), jnp.float32)
    coeffs = jax.block_until_ready(dct_blocks(blocks, cmat, cmat))

    ref = jnp.einsum("ij,bjk->bik", cmat, blocks)
    ref = jnp.swapaxes(ref, 2, 1)
    ref = jnp.einsum("ij,bjk->bik", cmat, ref)
    ref = jnp.swapaxes(ref, 2, 1)
    # Tolerance allows f32 re-association of the fused 64-term Kron reduction.
    np.testing.assert_allclose(np.asarray(coeffs), np.asarray(ref),
                               rtol=1e-3, atol=1e-1)

    # 3) YUV -> RGB
    rgb = jax.block_until_ready(yuv2rgb(yuv))
    rgb_ref = jnp.einsum("bchw,cd->bdhw", yuv - uvo, y2r.T)
    np.testing.assert_allclose(np.asarray(rgb), np.asarray(rgb_ref),
                               rtol=1e-5, atol=1e-3)

    print("KERNEL_OK")
</pallas_src>

<mosaic_0001>
module attributes {stable_mosaic.version = 11 : i64} {
  func.func @_rgb2yuv_kernel(%arg0: i32, %arg1: memref<1x3x256xf32, #tpu.memory_space<vmem>>, %arg2: memref<1x3x256xf32, #tpu.memory_space<vmem>>) attributes {dimension_semantics = [#tpu.dimension_semantics<parallel>], iteration_bounds = array<i64: 2>, scalar_prefetch = 0 : i64, scratch_operands = 0 : i64, tpu.core_type = #tpu.core_type<tc>, window_params = [{transform_indices = @transform_0, window_bounds = array<i64: 1, 3, 256>}, {transform_indices = @transform_1, window_bounds = array<i64: 1, 3, 256>}]} {
    %c0 = arith.constant 0 : index
    %c0_0 = arith.constant 0 : index
    %c0_1 = arith.constant 0 : index
    %0 = vector.load %arg1[%c0, %c0_0, %c0_1] : memref<1x3x256xf32, #tpu.memory_space<vmem>>, vector<1x1x256xf32>
    %1 = vector.shape_cast %0 : vector<1x1x256xf32> to vector<256xf32>
    %c0_2 = arith.constant 0 : index
    %c1 = arith.constant 1 : index
    %c0_3 = arith.constant 0 : index
    %2 = vector.load %arg1[%c0_2, %c1, %c0_3] : memref<1x3x256xf32, #tpu.memory_space<vmem>>, vector<1x1x256xf32>
    %3 = vector.shape_cast %2 : vector<1x1x256xf32> to vector<256xf32>
    %c0_4 = arith.constant 0 : index
    %c2 = arith.constant 2 : index
    %c0_5 = arith.constant 0 : index
    %4 = vector.load %arg1[%c0_4, %c2, %c0_5] : memref<1x3x256xf32, #tpu.memory_space<vmem>>, vector<1x1x256xf32>
    %5 = vector.shape_cast %4 : vector<1x1x256xf32> to vector<256xf32>
    %cst = arith.constant 2.990000e-01 : f32
    %6 = vector.broadcast %cst : f32 to vector<256xf32>
    %7 = arith.mulf %6, %1 : vector<256xf32>
    %cst_6 = arith.constant 5.870000e-01 : f32
    %8 = vector.broadcast %cst_6 : f32 to vector<256xf32>
    %9 = arith.mulf %8, %3 : vector<256xf32>
    %10 = arith.addf %7, %9 : vector<256xf32>
    %cst_7 = arith.constant 1.140000e-01 : f32
    %11 = vector.broadcast %cst_7 : f32 to vector<256xf32>
    %12 = arith.mulf %11, %5 : vector<256xf32>
    %13 = arith.addf %10, %12 : vector<256xf32>
    %c0_8 = arith.constant 0 : index
    %c0_9 = arith.constant 0 : index
    %c0_10 = arith.constant 0 : index
    %14 = vector.load %arg2[%c0_8, %c0_9, %c0_10] : memref<1x3x256xf32, #tpu.memory_space<vmem>>, vector<1x1x256xf32>
    %15 = vector.shape_cast %14 : vector<1x1x256xf32> to vector<256xf32>
    %16 = vector.shape_cast %13 : vector<256xf32> to vector<1x1x256xf32>
    tpu.vector_store %arg2[%c0_8, %c0_9, %c0_10], %16 {strides = array<i32>} : memref<1x3x256xf32, #tpu.memory_space<vmem>>, vector<1x1x256xf32>,
    %cst_11 = arith.constant -1.687360e-01 : f32
    %17 = vector.broadcast %cst_11 : f32 to vector<256xf32>
    %18 = arith.mulf %17, %1 : vector<256xf32>
    %cst_12 = arith.constant -3.312640e-01 : f32
    %19 = vector.broadcast %cst_12 : f32 to vector<256xf32>
    %20 = arith.mulf %19, %3 : vector<256xf32>
    %21 = arith.addf %18, %20 : vector<256xf32>
    %cst_13 = arith.constant 5.000000e-01 : f32
    %22 = vector.broadcast %cst_13 : f32 to vector<256xf32>
    %23 = arith.mulf %22, %5 : vector<256xf32>
    %24 = arith.addf %21, %23 : vector<256xf32>
    %cst_14 = arith.constant 1.280000e+02 : f32
    %25 = vector.broadcast %cst_14 : f32 to vector<256xf32>
    %26 = arith.addf %24, %25 : vector<256xf32>
    %c0_15 = arith.constant 0 : index
    %c1_16 = arith.constant 1 : index
    %c0_17 = arith.constant 0 : index
    %27 = vector.load %arg2[%c0_15, %c1_16, %c0_17] : memref<1x3x256xf32, #tpu.memory_space<vmem>>, vector<1x1x256xf32>
    %28 = vector.shape_cast %27 : vector<1x1x256xf32> to vector<256xf32>
    %29 = vector.shape_cast %26 : vector<256xf32> to vector<1x1x256xf32>
    tpu.vector_store %arg2[%c0_15, %c1_16, %c0_17], %29 {strides = array<i32>} : memref<1x3x256xf32, #tpu.memory_space<vmem>>, vector<1x1x256xf32>,
    %cst_18 = arith.constant 5.000000e-01 : f32
    %30 = vector.broadcast %cst_18 : f32 to vector<256xf32>
    %31 = arith.mulf %30, %1 : vector<256xf32>
    %cst_19 = arith.constant -4.186880e-01 : f32
    %32 = vector.broadcast %cst_19 : f32 to vector<256xf32>
    %33 = arith.mulf %32, %3 : vector<256xf32>
    %34 = arith.addf %31, %33 : vector<256xf32>
    %cst_20 = arith.constant -8.131200e-02 : f32
    %35 = vector.broadcast %cst_20 : f32 to vector<256xf32>
    %36 = arith.mulf %35, %5 : vector<256xf32>
    %37 = arith.addf %34, %36 : vector<256xf32>
    %cst_21 = arith.constant 1.280000e+02 : f32
    %38 = vector.broadcast %cst_21 : f32 to vector<256xf32>
    %39 = arith.addf %37, %38 : vector<256xf32>
    %c0_22 = arith.constant 0 : index
    %c2_23 = arith.constant 2 : index
    %c0_24 = arith.constant 0 : index
    %40 = vector.load %arg2[%c0_22, %c2_23, %c0_24] : memref<1x3x256xf32, #tpu.memory_space<vmem>>, vector<1x1x256xf32>
    %41 = vector.shape_cast %40 : vector<1x1x256xf32> to vector<256xf32>
    %42 = vector.shape_cast %39 : vector<256xf32> to vector<1x1x256xf32>
    tpu.vector_store %arg2[%c0_22, %c2_23, %c0_24], %42 {strides = array<i32>} : memref<1x3x256xf32, #tpu.memory_space<vmem>>, vector<1x1x256xf32>,
    return
  }
  func.func @transform_0(%arg0: i32) -> (i32, i32, i32) {
    %c0_i32 = arith.constant 0 : i32
    %c0_i32_0 = arith.constant 0 : i32
    %c0_i32_1 = arith.constant 0 : i32
    return %arg0, %c0_i32, %c0_i32_0 : i32, i32, i32
  }
  func.func @transform_1(%arg0: i32) -> (i32, i32, i32) {
    %c0_i32 = arith.constant 0 : i32
    %c0_i32_0 = arith.constant 0 : i32
    %c0_i32_1 = arith.constant 0 : i32
    return %arg0, %c0_i32, %c0_i32_0 : i32, i32, i32
  }
}

</mosaic_0001>

<llo_original>
// kernel: tpu_custom_call.1
$region0: #{tpu_custom_call.1}
  #allocation0 [shape = 'u32[]', space=smem, size = 0x4, offset = 0x4, fixed_abs, tag = 'smem constant byte address 0x4 - core index']
  #allocation1 [shape = 'u32[144,128]{1,0:T(1,128)}', space=vmem, size = 0x12000, scoped, tag = 'internal scratch']
  %s0 = inlined_call_operand.vmem [shape: f32[2,3,256], index: 0, kind: input, shape index: {}]
  %s1 = inlined_call_operand.vmem [shape: f32[2,3,256], index: 1, kind: output, shape index: {}]
  %s2 = sld [smem:[#allocation0]]
  $region37: #{tpu_custom_call.1} parent=0
    _
  %s4 = ssub.s32 1, %s2
  %s5 = scalar_select 0, %s4, %s2
  loop: start=0, step=1, limit=4
  $region2: #{tpu_custom_call.1} parent=0 // loop_pre_header
    _
  $region3: #{tpu_custom_call.1} parent=0 // loop_header
    %s7 = sphi 0, %s11
    %p8 = scmp.ge.s32.totalorder %s7, 4
    %s17 = sphi 0, %s19
    %s20 = sphi 0, %s17
    %s21 = sphi 0, %s20
    %s37 = sphi 0, %s21
    %s43 = sphi 0, %s45
    %s46 = sphi 0, %s43
    %s47 = sphi 0, %s46
    %s63 = sphi 0, %s47
  $region4: #{tpu_custom_call.1} parent=0 // loop_header_branch
    %10 = sbr.rel (%p8) target = $region8
  $region5: #{tpu_custom_call.1} parent=0 // loop_body
    %s12 = ssub.s32 %s7, 1
    %s13 = ssub.s32 %s7, 2
    %s14 = sadd.s32 %s7, 1
    %s15 = ssub.s32 %s7, %s14
    %p16 = scmp.eq.s32.totalorder %s15, 0
    %s18 = sadd.s32 %s17, 1
    %s19 = scalar_select %p16, %s17, %s18
    %p22 = pneg %p16
    %p23 = scmp.eq.s32.totalorder %s7, 1
    %p24 = por %p22, %p23
    %p25 = scmp.ne.s32.totalorder %s17, %s20
    %p26 = scmp.eq.s32.totalorder %s7, 0
    %p27 = por %p25, %p26
    %p28 = scmp.ne.s32.totalorder %s17, %s20
    %p29 = scmp.eq.s32.totalorder %s12, 1
    %p30 = por %p28, %p29
    %p31 = scmp.ne.s32.totalorder %s20, %s21
    %p32 = scmp.eq.s32.totalorder %s12, 0
    %p33 = por %p31, %p32
    %p34 = scmp.ne.s32.totalorder %s20, %s21
    %p35 = scmp.eq.s32.totalorder %s13, 1
    %p36 = por %p34, %p35
    %p38 = scmp.ne.s32.totalorder %s21, %s37
    %p39 = scmp.eq.s32.totalorder %s13, 0
    %p40 = por %p38, %p39
    %s41 = ssub.s32 %s7, %s14
    %p42 = scmp.eq.s32.totalorder %s41, 0
    %s44 = sadd.s32 %s43, 1
    %s45 = scalar_select %p42, %s43, %s44
    %p48 = pneg %p42
    %p49 = scmp.eq.s32.totalorder %s7, 1
    %p50 = por %p48, %p49
    %p51 = scmp.ne.s32.totalorder %s43, %s46
    %p52 = scmp.eq.s32.totalorder %s7, 0
    %p53 = por %p51, %p52
    %p54 = scmp.ne.s32.totalorder %s43, %s46
    %p55 = scmp.eq.s32.totalorder %s12, 1
    %p56 = por %p54, %p55
    %p57 = scmp.ne.s32.totalorder %s46, %s47
    %p58 = scmp.eq.s32.totalorder %s12, 0
    %p59 = por %p57, %p58
    %p60 = scmp.ne.s32.totalorder %s46, %s47
    %p61 = scmp.eq.s32.totalorder %s13, 1
    %p62 = por %p60, %p61
    %p64 = scmp.ne.s32.totalorder %s47, %s63
    %p65 = scmp.eq.s32.totalorder %s13, 0
    %p66 = por %p64, %p65
    %p67 = scmp.le.s32.totalorder 1, %s7
    %p68 = scmp.lt.s32.totalorder %s7, 3
    %p69 = pnand %p67, %p68
    %p70 = pneg %p69
    // Predicated region
    $region9: #{tpu_custom_call.1} parent=5 // pred_check
      _
    $region10: #{tpu_custom_call.1} parent=5 // pred_check_branch
      %72 = sbr.rel (%p69) target = $region12
    $region11: #{tpu_custom_call.1} parent=5 // pred_region
      %s73 = ssub.s32 %s7, 1
    $region12: #{tpu_custom_call.1} parent=5 // pred_fallthru
      _
    %p74 = scmp.lt.s32.totalorder %s7, 2
    // Predicated region
    $region13: #{tpu_custom_call.1} parent=5 // pred_check
      %p75 = pneg %p74
    $region14: #{tpu_custom_call.1} parent=5 // pred_check_branch
      %77 = sbr.rel (%p75) target = $region16
    $region15: #{tpu_custom_call.1} parent=5 // pred_region
      // Predicated region
      $region17: #{tpu_custom_call.1} parent=15 // pred_check
        %p78 = pneg %p27
      $region18: #{tpu_custom_call.1} parent=15 // pred_check_branch
        %80 = sbr.rel (%p78) target = $region20
      $region19: #{tpu_custom_call.1} parent=15 // pred_region
        %p81 = scmp.lt.s32.totalorder %s7, 1
        %s82 = scalar_select %p81, %s7, 1
        %s83 = smul.addr %s82, 2
        %s84 = smul.addr %s83, 4
        %s85 = scalar_lea.vmem %s0, %s84
      $region20: #{tpu_custom_call.1} parent=15 // pred_fallthru
        _
    $region16: #{tpu_custom_call.1} parent=5 // pred_fallthru
      _
    %p86 = scmp.le.s32.totalorder 1, %s7
    %p87 = scmp.lt.s32.totalorder %s7, 3
    %p88 = pnand %p86, %p87
    %p89 = pneg %p88
    // Predicated region
    $region21: #{tpu_custom_call.1} parent=5 // pred_check
      _
    $region22: #{tpu_custom_call.1} parent=5 // pred_check_branch
      %91 = sbr.rel (%p88) target = $region24
    $region23: #{tpu_custom_call.1} parent=5 // pred_region
      %s92 = ssub.s32 %s7, 1
      %p93 = scmp.lt.s32.totalorder %s12, 1
      %s94 = scalar_select %p93, %s12, 1
      %s95 = smul.addr %s94, 2
      %s96 = smul.addr %s95, 4
      %s97 = scalar_lea.vmem %s0, %s96
      %p98 = pneg %p33
      %p99 = pneg %p30
      %p100 = pneg %p59
      %p101 = pneg %p56
      %p102 = scmp.lt.s32.totalorder %s12, 1
      %s103 = scalar_select %p102, %s12, 1
      %s104 = smul.addr %s103, 2
      %s105 = smul.addr %s104, 4
      %s106 = scalar_lea.vmem %s1, %s105
      %p107 = scmp.lt.s32.totalorder %s12, 1
      %s108 = scalar_select %p107, %s12, 1
      %s109 = smul.addr %s108, 2
      %s110 = smul.addr %s109, 4
      %s111 = scalar_lea.vmem %s0, %s110
      %p112 = scmp.lt.s32.totalorder %s12, 1
      %s113 = scalar_select %p112, %s12, 1
      %s114 = smul.addr %s113, 2
      %s115 = smul.addr %s114, 4
      %s116 = scalar_lea.vmem %s1, %s115
      %v117 = vld [vmem:[%s111] ss:$4 sm:$0x3]
      %s118 = scalar_lea.vmem %s111, 1
      %v119 = vld [vmem:[%s118] ss:$4 sm:$0x3]
      %s120 = scalar_lea.vmem %s111, 2
      %v121 = vld [vmem:[%s120] ss:$4 sm:$0x3]
      %v122 = vmul.f32 %v117, 0.299
      %v123 = vmul.f32 %v119, 0.587
      %v124 = vadd.f32 %v122, %v123
      %v125 = vmul.f32 %v121, 0.114
      %v126 = vadd.f32 %v124, %v125
      %v127 = vlaneseq
      %vm128 = vcmp.ge.s32.totalorder %v127, 0
      %vm129 = vcmp.lt.s32.totalorder %v127, 256
      %vm130 = vmand %vm128, %vm129
      %131 = vst.msk [vmem:[%s116] ss:$4 sm:$0x3] %vm130, %v126
      %v132 = vmul.f32 %v117, -0.168736
      %v133 = vmul.f32 %v119, -0.331264
      %v134 = vadd.f32 %v132, %v133
      %v135 = vmul.f32 %v121, 0.5
      %v136 = vadd.f32 %v134, %v135
      %v137 = vadd.f32 %v136, 128.0
      %s138 = scalar_lea.vmem %s116, 1
      %139 = vst.msk [vmem:[%s138] ss:$4 sm:$0x3] %vm130, %v137
      %v140 = vmul.f32 %v117, 0.5
      %v141 = vmul.f32 %v119, -0.418688
      %v142 = vadd.f32 %v140, %v141
      %v143 = vmul.f32 %v121, -0.081312
      %v144 = vadd.f32 %v142, %v143
      %v145 = vadd.f32 %v144, 128.0
      %s146 = scalar_lea.vmem %s116, 2
      %147 = vst.msk [vmem:[%s146] ss:$4 sm:$0x3] %vm130, %v145
      %p148 = scmp.lt.s32.totalorder %s12, 1
      %s149 = scalar_select %p148, %s12, 1
      %s150 = smul.addr %s149, 2
      %s151 = smul.addr %s150, 4
      %s152 = scalar_lea.vmem %s1, %s151
      // Predicated region
      $region25: #{tpu_custom_call.1} parent=23 // pred_check
        %p153 = pneg %p56
      $region26: #{tpu_custom_call.1} parent=23 // pred_check_branch
        %155 = sbr.rel (%p153) target = $region28
      $region27: #{tpu_custom_call.1} parent=23 // pred_region
        _
      $region28: #{tpu_custom_call.1} parent=23 // pred_fallthru
        _
    $region24: #{tpu_custom_call.1} parent=5 // pred_fallthru
      _
    %p156 = scmp.le.s32.totalorder 2, %s7
    // Predicated region
    $region29: #{tpu_custom_call.1} parent=5 // pred_check
      %p157 = pneg %p156
    $region30: #{tpu_custom_call.1} parent=5 // pred_check_branch
      %159 = sbr.rel (%p157) target = $region32
    $region31: #{tpu_custom_call.1} parent=5 // pred_region
      %s160 = ssub.s32 %s7, 2
      // Predicated region
      $region33: #{tpu_custom_call.1} parent=31 // pred_check
        %p161 = pneg %p62
      $region34: #{tpu_custom_call.1} parent=31 // pred_check_branch
        %163 = sbr.rel (%p161) target = $region36
      $region35: #{tpu_custom_call.1} parent=31 // pred_region
        %p164 = scmp.lt.s32.totalorder %s13, 1
        %s165 = scalar_select %p164, %s13, 1
        %s166 = smul.addr %s165, 2
        %s167 = smul.addr %s166, 4
        %s168 = scalar_lea.vmem %s1, %s167
      $region36: #{tpu_custom_call.1} parent=31 // pred_fallthru
        _
    $region32: #{tpu_custom_call.1} parent=5 // pred_fallthru
      _
  $region6: #{tpu_custom_call.1} parent=0 // loop_footer
    %s11 = sadd.s32 1, %s7
  $region7: #{tpu_custom_call.1} parent=0 // loop_footer_branch
    %6 = sbr.rel target = $region3
  $region8: #{tpu_custom_call.1} parent=0 // loop_exit
    _

</llo_original>
